<compile_context>
chip_gen: v6e
topology: v6e:2x2x1
jax: 0.10.0
libtpu: 0.0.40
codegen_flags: <defaults>
</compile_context>

<pallas_src>
import functools

import jax
import jax.numpy as jnp
import numpy as np
from jax.experimental import pallas as pl
from jax.experimental.pallas import tpu as pltpu


def _round_up(x, m):
    return (x + m - 1) // m * m


@functools.partial(jax.jit, static_argnames=("words_per_tile",))
def cnn_forward(emb, weight, bias, *, words_per_tile=8):
    """emb: (B, L, C_in) f32; weight: (K, C_in, F) f32 (tap-major); bias: (F,) f32.

    Returns (values, indices) matching
    torch.max(relu(conv1d(emb.permute(0,2,1))).permute(0,2,1), dim=1).
    Indices are int32.  # TODO(synk): torch.max returns int64; int64 needs jax x64 mode.
    """
    B, L, C_in = emb.shape
    K, C_in_w, F = weight.shape
    assert C_in_w == C_in
    L_out = L - K + 1
    assert L_out >= 1

    # Sublane-aligned sizes: each word's conv rows padded to a multiple of 8;
    # input rows padded so every tap's L_pad-row window stays in bounds.
    L_pad = _round_up(L_out, 8)
    L_in_pad = _round_up(L_pad + K - 1, 8)

    TB = min(B, words_per_tile)
    if B > TB:
        assert TB % 8 == 0, "words_per_tile must be a multiple of 8 when tiling the batch"
    B_pad = _round_up(B, TB)
    grid = (B_pad // TB,)

    emb_p = jnp.pad(emb, ((0, B_pad - B), (0, L_in_pad - L), (0, 0)))
    w2d = weight.reshape(K * C_in, F)   # column order: tap-major, then channel (matches concat below)
    b2d = bias.reshape(1, F)

    def kernel(x_ref, w_ref, b_ref, out_ref):
        # x_ref: (TB, L_in_pad, C_in)  raw embeddings for this tile of words
        # w_ref: (K*C_in, F)           conv weight, tap-major columns
        # b_ref: (1, F)                conv bias
        # out_ref: (TB, 2F)            packed [max values | argmax as f32]
        x = x_ref[...]
        # In-kernel im2col: K tap-shifted L_pad-row views, lane-concatenated.
        win = jnp.concatenate([x[:, k:k + L_pad, :] for k in range(K)], axis=-1)
        # Single fused MXU matmul for all taps and all words in the tile
        # (merge of (TB, L_pad) rows is sublane-tile aligned: L_pad % 8 == 0).
        acc = jnp.dot(win.reshape(TB * L_pad, K * C_in), w_ref[...],
                      preferred_element_type=jnp.float32)
        acc = jnp.maximum(acc + b_ref[...], 0.0).reshape(TB, L_pad, F)
        # Mask padded positions (t >= L_out) so they can never win max/argmax.
        pos = jax.lax.broadcasted_iota(jnp.int32, (TB, L_pad, F), 1)
        acc = jnp.where(pos < L_out, acc, -jnp.inf)
        vals = jnp.max(acc, axis=1)                               # (TB, F)
        # First-occurrence argmax reusing the computed max (no second full reduction).
        hit = jnp.where(acc == vals[:, None, :], pos, L_pad)
        idx = jnp.min(hit, axis=1)                                # (TB, F) int32
        # One lane-dense packed store; small integer indices are exact in f32.
        out_ref[...] = jnp.concatenate([vals, idx.astype(jnp.float32)], axis=-1)

    flops = 2 * B_pad * L_pad * (K * C_in) * F
    bytes_accessed = 4 * (emb_p.size + w2d.size + b2d.size + B_pad * 2 * F)

    packed = pl.pallas_call(
        kernel,
        grid=grid,
        out_shape=jax.ShapeDtypeStruct((B_pad, 2 * F), jnp.float32),
        in_specs=[
            pl.BlockSpec((TB, L_in_pad, C_in), lambda i: (i, 0, 0)),
            pl.BlockSpec((K * C_in, F), lambda i: (0, 0)),
            pl.BlockSpec((1, F), lambda i: (0, 0)),
        ],
        out_specs=pl.BlockSpec((TB, 2 * F), lambda i: (i, 0)),
        compiler_params=pltpu.CompilerParams(dimension_semantics=("parallel",)),
        cost_estimate=pl.CostEstimate(
            flops=flops, transcendentals=0, bytes_accessed=bytes_accessed),
    )(emb_p, w2d, b2d)

    values = packed[:B, :F]
    indices = packed[:B, F:].astype(jnp.int32)
    return values, indices


def cnn_reference(emb, weight, bias):
    """Pure-JAX reference of the same forward pass."""
    B, L, C = emb.shape
    K = weight.shape[0]
    L_out = L - K + 1
    windows = jnp.stack([emb[:, k:k + L_out, :] for k in range(K)], axis=0)  # (K,B,L_out,C)
    conv = jnp.einsum('kbtc,kcf->btf', windows, weight) + bias[None, None, :]
    conv_relu = jnp.maximum(conv, 0.0)
    return (conv_relu,
            jnp.max(conv_relu, axis=1),
            jnp.argmax(conv_relu, axis=1).astype(jnp.int32))


if __name__ == "__main__":
    # Small shapes consistent with the module (char-CNN over one word batch).
    B, L, C_IN, F, K = 2, 16, 4, 32, 5
    L_OUT = L - K + 1

    key = jax.random.PRNGKey(0)
    k_emb, k_w, k_b = jax.random.split(key, 3)
    emb = jax.random.normal(k_emb, (B, L, C_IN), dtype=jnp.float32)
    fan_in = C_IN * K
    bound = 1.0 / np.sqrt(fan_in)
    # torch Conv1d weight is (F, C_IN, K); stored here tap-major as (K, C_IN, F).
    weight = jax.random.uniform(k_w, (K, C_IN, F), minval=-bound, maxval=bound,
                                dtype=jnp.float32)
    bias = jax.random.uniform(k_b, (F,), minval=-bound, maxval=bound,
                              dtype=jnp.float32)

    vals, idxs = cnn_forward(emb, weight, bias)
    vals = jax.block_until_ready(vals)
    idxs = jax.block_until_ready(idxs)

    conv_relu_ref, ref_vals, ref_idxs = cnn_reference(emb, weight, bias)
    vals_np = np.asarray(vals)
    idxs_np = np.asarray(idxs)
    conv_relu_np = np.asarray(conv_relu_ref)

    assert vals_np.shape == (B, F) and idxs_np.shape == (B, F)
    assert idxs_np.dtype == np.int32
    assert np.allclose(vals_np, np.asarray(ref_vals), atol=1e-5, rtol=1e-5)
    # Argmax validation robust to f32 accumulation-order near-ties:
    assert idxs_np.min() >= 0 and idxs_np.max() < L_OUT
    gathered = np.take_along_axis(conv_relu_np, idxs_np[:, None, :], axis=1)[:, 0, :]
    assert np.allclose(gathered, vals_np, atol=1e-5, rtol=1e-5)
    # Where the top-1/top-2 gap is clearly non-degenerate, indices must match exactly.
    srt = np.sort(conv_relu_np, axis=1)
    clear = (srt[:, -1, :] - srt[:, -2, :]) > 1e-5
    assert np.array_equal(idxs_np[clear], np.asarray(ref_idxs)[clear])

    print("KERNEL_OK")
</pallas_src>

<mosaic_0001>
module attributes {stable_mosaic.version = 11 : i64} {
  func.func @kernel(%arg0: i32, %arg1: memref<2x24x4xf32, #tpu.memory_space<vmem>>, %arg2: memref<20x32xf32, #tpu.memory_space<vmem>>, %arg3: memref<1x32xf32, #tpu.memory_space<vmem>>, %arg4: memref<2x64xf32, #tpu.memory_space<vmem>>) attributes {dimension_semantics = [#tpu.dimension_semantics<parallel>], iteration_bounds = array<i64: 1>, scalar_prefetch = 0 : i64, scratch_operands = 0 : i64, tpu.core_type = #tpu.core_type<tc>, window_params = [{transform_indices = @transform_0, window_bounds = array<i64: 2, 24, 4>}, {pipeline_mode = #tpu.pipeline_mode<synchronous>, transform_indices = @transform_1, window_bounds = array<i64: 20, 32>}, {pipeline_mode = #tpu.pipeline_mode<synchronous>, transform_indices = @transform_2, window_bounds = array<i64: 1, 32>}, {transform_indices = @transform_3, window_bounds = array<i64: 2, 64>}]} {
    %c0 = arith.constant 0 : index
    %c0_0 = arith.constant 0 : index
    %c0_1 = arith.constant 0 : index
    %0 = vector.load %arg1[%c0, %c0_0, %c0_1] : memref<2x24x4xf32, #tpu.memory_space<vmem>>, vector<2x24x4xf32>
    %1 = vector.extract_strided_slice %0 {offsets = [0, 0, 0], sizes = [2, 16, 4], strides = [1, 1, 1]} : vector<2x24x4xf32> to vector<2x16x4xf32>
    %2 = vector.extract_strided_slice %0 {offsets = [0, 1, 0], sizes = [2, 16, 4], strides = [1, 1, 1]} : vector<2x24x4xf32> to vector<2x16x4xf32>
    %3 = vector.extract_strided_slice %0 {offsets = [0, 2, 0], sizes = [2, 16, 4], strides = [1, 1, 1]} : vector<2x24x4xf32> to vector<2x16x4xf32>
    %4 = vector.extract_strided_slice %0 {offsets = [0, 3, 0], sizes = [2, 16, 4], strides = [1, 1, 1]} : vector<2x24x4xf32> to vector<2x16x4xf32>
    %5 = vector.extract_strided_slice %0 {offsets = [0, 4, 0], sizes = [2, 16, 4], strides = [1, 1, 1]} : vector<2x24x4xf32> to vector<2x16x4xf32>
    %6 = tpu.concatenate %1, %2, %3, %4, %5 in 2 : vector<2x16x4xf32>, vector<2x16x4xf32>, vector<2x16x4xf32>, vector<2x16x4xf32>, vector<2x16x4xf32> -> vector<2x16x20xf32>
    %7 = vector.shape_cast %6 : vector<2x16x20xf32> to vector<32x20xf32>
    %c0_2 = arith.constant 0 : index
    %c0_3 = arith.constant 0 : index
    %8 = vector.load %arg2[%c0_2, %c0_3] : memref<20x32xf32, #tpu.memory_space<vmem>>, vector<20x32xf32>
    %cst = arith.constant dense<0.000000e+00> : vector<32x32xf32>
    %9 = tpu.matmul %7, %8, %cst {dimension_numbers = #tpu.dot_dimension_numbers<[1], [0], [0], [1], [0, 0, 1, 1], [], []>} : vector<32x20xf32>, vector<20x32xf32>, vector<32x32xf32> -> vector<32x32xf32>
    %c0_4 = arith.constant 0 : index
    %c0_5 = arith.constant 0 : index
    %10 = vector.load %arg3[%c0_4, %c0_5] : memref<1x32xf32, #tpu.memory_space<vmem>>, vector<1x32xf32>
    %11 = vector.broadcast %10 : vector<1x32xf32> to vector<32x32xf32>
    %12 = arith.addf %9, %11 : vector<32x32xf32>
    %cst_6 = arith.constant 0.000000e+00 : f32
    %13 = vector.broadcast %cst_6 : f32 to vector<32x32xf32>
    %14 = arith.maximumf %12, %13 : vector<32x32xf32>
    %15 = vector.shape_cast %14 : vector<32x32xf32> to vector<2x16x32xf32>
    %16 = tpu.iota {dimensions = array<i32: 1>} : vector<2x16x32xi32>
    %c12_i32 = arith.constant 12 : i32
    %17 = vector.broadcast %c12_i32 : i32 to vector<2x16x32xi32>
    %18 = arith.cmpi slt, %16, %17 : vector<2x16x32xi32>
    %cst_7 = arith.constant 0xFF800000 : f32
    %19 = vector.broadcast %cst_7 : f32 to vector<2x16x32xf32>
    %20 = arith.select %18, %15, %19 : vector<2x16x32xi1>, vector<2x16x32xf32>
    %cst_8 = arith.constant dense<0xFF800000> : vector<2x32xf32>
    %21 = vector.multi_reduction <maximumf>, %20, %cst_8 [1] : vector<2x16x32xf32> to vector<2x32xf32>
    %22 = vector.shape_cast %21 : vector<2x32xf32> to vector<2x1x32xf32>
    %23 = vector.broadcast %22 : vector<2x1x32xf32> to vector<2x16x32xf32>
    %24 = arith.cmpf oeq, %20, %23 : vector<2x16x32xf32>
    %c16_i32 = arith.constant 16 : i32
    %25 = vector.broadcast %c16_i32 : i32 to vector<2x16x32xi32>
    %26 = arith.select %24, %16, %25 : vector<2x16x32xi1>, vector<2x16x32xi32>
    %cst_9 = arith.constant dense<2147483647> : vector<2x32xi32>
    %27 = vector.multi_reduction <minsi>, %26, %cst_9 [1] : vector<2x16x32xi32> to vector<2x32xi32>
    %28 = arith.sitofp %27 : vector<2x32xi32> to vector<2x32xf32>
    %29 = tpu.concatenate %21, %28 in 1 : vector<2x32xf32>, vector<2x32xf32> -> vector<2x64xf32>
    %c0_10 = arith.constant 0 : index
    %c0_11 = arith.constant 0 : index
    %30 = vector.load %arg4[%c0_10, %c0_11] : memref<2x64xf32, #tpu.memory_space<vmem>>, vector<2x64xf32>
    tpu.vector_store %arg4[%c0_10, %c0_11], %29 {strides = array<i32>} : memref<2x64xf32, #tpu.memory_space<vmem>>, vector<2x64xf32>,
    return
  }
  func.func @transform_0(%arg0: i32) -> (i32, i32, i32) {
    %c0_i32 = arith.constant 0 : i32
    %c0_i32_0 = arith.constant 0 : i32
    %c0_i32_1 = arith.constant 0 : i32
    return %arg0, %c0_i32, %c0_i32_0 : i32, i32, i32
  }
  func.func @transform_1(%arg0: i32) -> (i32, i32) {
    %c0_i32 = arith.constant 0 : i32
    %c0_i32_0 = arith.constant 0 : i32
    %c0_i32_1 = arith.constant 0 : i32
    return %c0_i32, %c0_i32_0 : i32, i32
  }
  func.func @transform_2(%arg0: i32) -> (i32, i32) {
    %c0_i32 = arith.constant 0 : i32
    %c0_i32_0 = arith.constant 0 : i32
    %c0_i32_1 = arith.constant 0 : i32
    return %c0_i32, %c0_i32_0 : i32, i32
  }
  func.func @transform_3(%arg0: i32) -> (i32, i32) {
    %c0_i32 = arith.constant 0 : i32
    %c0_i32_0 = arith.constant 0 : i32
    return %arg0, %c0_i32 : i32, i32
  }
}

</mosaic_0001>

<llo_original>
// kernel: cnn_forward.1
$region0: #{cnn_forward.1}
  #allocation0 [shape = 'u32[]', space=smem, size = 0x4, offset = 0x4, fixed_abs, tag = 'smem constant byte address 0x4 - core index']
  #allocation1 [shape = 'u32[144,128]{1,0:T(1,128)}', space=vmem, size = 0x12000, scoped, tag = 'internal scratch']
  %s0 = inlined_call_operand.vmem [shape: f32[2,24,4], index: 0, kind: input, shape index: {}]
  %s1 = inlined_call_operand.vmem [shape: f32[20,32], index: 1, kind: input, shape index: {}]
  %s2 = inlined_call_operand.vmem [shape: f32[1,32], index: 2, kind: input, shape index: {}]
  %s3 = inlined_call_operand.vmem [shape: f32[2,64], index: 3, kind: output, shape index: {}]
  %s4 = sld [smem:[#allocation0]]
  $region22: #{cnn_forward.1} parent=0
    _
  %s6 = ssub.s32 1, %s4
  %s7 = scalar_select 0, %s6, %s4
  // Predicated region
  $region2: #{cnn_forward.1} parent=0 // pred_check
    _
  $region3: #{cnn_forward.1} parent=0 // pred_check_branch
    %9 = sbr.rel (0) target = $region5
  $region4: #{cnn_forward.1} parent=0 // pred_region
    _
  $region5: #{cnn_forward.1} parent=0 // pred_fallthru
    _
  // Predicated region
  $region6: #{cnn_forward.1} parent=0 // pred_check
    _
  $region7: #{cnn_forward.1} parent=0 // pred_check_branch
    %11 = sbr.rel (0) target = $region9
  $region8: #{cnn_forward.1} parent=0 // pred_region
    _
  $region9: #{cnn_forward.1} parent=0 // pred_fallthru
    _
  // Predicated region
  $region10: #{cnn_forward.1} parent=0 // pred_check
    _
  $region11: #{cnn_forward.1} parent=0 // pred_check_branch
    %13 = sbr.rel (0) target = $region13
  $region12: #{cnn_forward.1} parent=0 // pred_region
    _
  $region13: #{cnn_forward.1} parent=0 // pred_fallthru
    _
  %v14 = vld [vmem:[%s0] sm:$0xff]
  %v15 = vld [vmem:[%s0 + $0x8] sm:$0xff]
  %v16 = vld [vmem:[%s0 + $0x10] sm:$0xff]
  %v17 = vld [vmem:[%s0 + $0x18] sm:$0xff]
  %v18 = vld [vmem:[%s0 + $0x20] sm:$0xff]
  %v19 = vld [vmem:[%s0 + $0x28] sm:$0xff]
  %vm26 = vcmask 1046528
  %v27 = vrot.slane %v14, 1
  %v28 = vrot.slane %v15, 1
  %v29 = vsel %vm26, %v27, %v28
  %v30 = vrot.slane %v16, 1
  %v31 = vsel %vm26, %v28, %v30
  %v32 = vrot.slane %v17, 1
  %v33 = vrot.slane %v18, 1
  %v34 = vsel %vm26, %v32, %v33
  %v35 = vrot.slane %v19, 1
  %v36 = vsel %vm26, %v33, %v35
  %37 = vrot.lane.b32.xlu0 %v29, 4
  %v38 = vpop.permute.xlu0 %37
  %39 = vrot.lane.b32.xlu0 %v31, 4
  %v40 = vpop.permute.xlu0 %39
  %41 = vrot.lane.b32.xlu0 %v34, 4
  %v42 = vpop.permute.xlu0 %41
  %43 = vrot.lane.b32.xlu0 %v36, 4
  %v44 = vpop.permute.xlu0 %43
  %vm49 = vcmask 1045504
  %v50 = vrot.slane %v14, 2
  %v51 = vrot.slane %v15, 2
  %v52 = vsel %vm49, %v50, %v51
  %v53 = vrot.slane %v16, 2
  %v54 = vsel %vm49, %v51, %v53
  %v55 = vrot.slane %v17, 2
  %v56 = vrot.slane %v18, 2
  %v57 = vsel %vm49, %v55, %v56
  %v58 = vrot.slane %v19, 2
  %v59 = vsel %vm49, %v56, %v58
  %60 = vrot.lane.b32.xlu0 %v52, 8
  %v61 = vpop.permute.xlu0 %60
  %62 = vrot.lane.b32.xlu0 %v54, 8
  %v63 = vpop.permute.xlu0 %62
  %64 = vrot.lane.b32.xlu0 %v57, 8
  %v65 = vpop.permute.xlu0 %64
  %66 = vrot.lane.b32.xlu0 %v59, 8
  %v67 = vpop.permute.xlu0 %66
  %vm72 = vcmask 1044480
  %v73 = vrot.slane %v14, 3
  %v74 = vrot.slane %v15, 3
  %v75 = vsel %vm72, %v73, %v74
  %v76 = vrot.slane %v16, 3
  %v77 = vsel %vm72, %v74, %v76
  %v78 = vrot.slane %v17, 3
  %v79 = vrot.slane %v18, 3
  %v80 = vsel %vm72, %v78, %v79
  %v81 = vrot.slane %v19, 3
  %v82 = vsel %vm72, %v79, %v81
  %83 = vrot.lane.b32.xlu0 %v75, 12
  %v84 = vpop.permute.xlu0 %83
  %85 = vrot.lane.b32.xlu0 %v77, 12
  %v86 = vpop.permute.xlu0 %85
  %87 = vrot.lane.b32.xlu0 %v80, 12
  %v88 = vpop.permute.xlu0 %87
  %89 = vrot.lane.b32.xlu0 %v82, 12
  %v90 = vpop.permute.xlu0 %89
  %vm95 = vcmask 1043456
  %v96 = vrot.slane %v14, 4
  %v97 = vrot.slane %v15, 4
  %v98 = vsel %vm95, %v96, %v97
  %v99 = vrot.slane %v16, 4
  %v100 = vsel %vm95, %v97, %v99
  %v101 = vrot.slane %v17, 4
  %v102 = vrot.slane %v18, 4
  %v103 = vsel %vm95, %v101, %v102
  %v104 = vrot.slane %v19, 4
  %v105 = vsel %vm95, %v102, %v104
  %106 = vrot.lane.b32.xlu0 %v98, 16
  %v107 = vpop.permute.xlu0 %106
  %108 = vrot.lane.b32.xlu0 %v100, 16
  %v109 = vpop.permute.xlu0 %108
  %110 = vrot.lane.b32.xlu0 %v103, 16
  %v111 = vpop.permute.xlu0 %110
  %112 = vrot.lane.b32.xlu0 %v105, 16
  %v113 = vpop.permute.xlu0 %112
  %vm118 = vcmask 31744
  %v119 = vsel %vm118, %v14, %v38
  %v120 = vsel %vm118, %v15, %v40
  %v121 = vsel %vm118, %v17, %v42
  %v122 = vsel %vm118, %v18, %v44
  %vm123 = vcmask 64512
  %v124 = vsel %vm123, %v119, %v61
  %v125 = vsel %vm123, %v120, %v63
  %v126 = vsel %vm123, %v121, %v65
  %v127 = vsel %vm123, %v122, %v67
  %vm128 = vcmask 97280
  %v129 = vsel %vm128, %v124, %v84
  %v130 = vsel %vm128, %v125, %v86
  %v131 = vsel %vm128, %v126, %v88
  %v132 = vsel %vm128, %v127, %v90
  %vm133 = vcmask 130048
  %v134 = vsel %vm133, %v129, %v107
  %v135 = vsel %vm133, %v130, %v109
  %v136 = vsel %vm133, %v131, %v111
  %v137 = vsel %vm133, %v132, %v113
  %v138 = vld [vmem:[%s1] sm:$0xff]
  %v139 = vld [vmem:[%s1 + $0x8] sm:$0xff]
  %v140 = vld [vmem:[%s1 + $0x10] sm:$0xf]
  %v141 = vld [vmem:[%s2] sm:$0x1]
  %v143 = vlaneseq
  %v144 = vshrl.u32 %v143, 7
  %v145 = vsub.s32 0, %v144
  %v146 = vrot.slane %v141, %v145
  %vm148 = vcmask 162816
  %v150 = vsel %vm148, %v134, 0
  %v153 = vsel %vm148, %v135, 0
  %v156 = vsel %vm148, %v136, 0
  %v159 = vsel %vm148, %v137, 0
  %v162 = vsel %vm95, %v140, 0
  %164 = vmatprep.subr.mxu0 0.0
  %165 = vmatpush1.msra.mxu0 0.0
  %166 = vmatprep.subr.mxu0 0.0
  %167 = vmatpush1.msra.mxu0 0.0
  %168 = vmatprep.subr.mxu0 0.0
  %169 = vmatpush1.msra.mxu0 0.0
  %170 = vmatprep.subr.mxu0 0.0
  %171 = vmatpush1.msra.mxu0 0.0
  %172 = vmatprep.subr.mxu0 0.0
  %173 = vmatpush1.msra.mxu0 0.0
  %174 = vmatprep.subr.mxu0 0.0
  %175 = vmatpush1.msra.mxu0 0.0
  %176 = vmatprep.subr.mxu0 0.0
  %177 = vmatpush1.msra.mxu0 0.0
  %178 = vmatprep.subr.mxu0 0.0
  %179 = vmatpush1.msra.mxu0 0.0
  %180 = vmatprep.subr.mxu0 0.0
  %181 = vmatpush1.msra.mxu0 0.0
  %182 = vmatprep.subr.mxu0 0.0
  %183 = vmatpush1.msra.mxu0 0.0
  %184 = vmatprep.subr.mxu0 0.0
  %185 = vmatpush1.msra.mxu0 0.0
  %186 = vmatprep.subr.mxu0 0.0
  %187 = vmatpush1.msra.mxu0 0.0
  %188 = vmatprep.subr.mxu0 0.0
  %189 = vmatpush1.msra.mxu0 0.0
  %190 = vmatprep.subr.mxu0 0.0
  %191 = vmatpush1.msra.mxu0 %v162
  %192 = vmatprep.subr.mxu0 0.0
  %193 = vmatpush1.msra.mxu0 %v139
  %194 = vmatprep.subr.mxu0 0.0
  %195 = vmatpush1.msra.mxu0 %v138
  %196 = vmatprep.subr.mxu0 0.0
  %197 = vmatpush2.msra.mxu0 0.0
  %198 = vmatprep.subr.mxu0 0.0
  %199 = vmatpush2.msra.mxu0 0.0
  %200 = vmatprep.subr.mxu0 0.0
  %201 = vmatpush2.msra.mxu0 0.0
  %202 = vmatprep.subr.mxu0 0.0
  %203 = vmatpush2.msra.mxu0 0.0
  %204 = vmatprep.subr.mxu0 0.0
  %205 = vmatpush2.msra.mxu0 0.0
  %206 = vmatprep.subr.mxu0 0.0
  %207 = vmatpush2.msra.mxu0 0.0
  %208 = vmatprep.subr.mxu0 0.0
  %209 = vmatpush2.msra.mxu0 0.0
  %210 = vmatprep.subr.mxu0 0.0
  %211 = vmatpush2.msra.mxu0 0.0
  %212 = vmatprep.subr.mxu0 0.0
  %213 = vmatpush2.msra.mxu0 0.0
  %214 = vmatprep.subr.mxu0 0.0
  %215 = vmatpush2.msra.mxu0 0.0
  %216 = vmatprep.subr.mxu0 0.0
  %217 = vmatpush2.msra.mxu0 0.0
  %218 = vmatprep.subr.mxu0 0.0
  %219 = vmatpush2.msra.mxu0 0.0
  %220 = vmatprep.subr.mxu0 0.0
  %221 = vmatpush2.msra.mxu0 0.0
  %222 = vmatprep.subr.mxu0 0.0
  %223 = vmatpush2.msra.mxu0 0.0
  %224 = vmatprep.subr.mxu0 0.0
  %225 = vmatpush2.msra.mxu0 0.0
  %226 = vmatprep.subr.mxu0 0.0
  %227 = vmatpush2.msra.mxu0 0.0
  %228 = vmatprep.mubr.f32.mxu0 0.0
  %229 = vmatmul.mubr.f32.gmra.mxu0 %v150
  %v230 = vpop.f32.mrf.mxu0
  %v231 = vadd.f32 %v146, %v230
  %v232 = vpop.f32.mrf.mxu0
  %233 = vmatprep.mubr.f32.mxu0 0.0
  %234 = vmatmul.mubr.f32.gmra.mxu0 %v153
  %v235 = vpop.f32.mrf.mxu0
  %v236 = vadd.f32 %v146, %v235
  %v237 = vpop.f32.mrf.mxu0
  %238 = vmatprep.mubr.f32.mxu0 0.0
  %239 = vmatmul.mubr.f32.gmra.mxu0 %v156
  %v240 = vpop.f32.mrf.mxu0
  %v241 = vadd.f32 %v146, %v240
  %v242 = vpop.f32.mrf.mxu0
  %243 = vmatprep.mubr.f32.mxu0 0.0
  %244 = vmatmul.mubr.f32.gmra.mxu0 %v159
  %v245 = vpop.f32.mrf.mxu0
  %v246 = vadd.f32 %v146, %v245
  %v247 = vpop.f32.mrf.mxu0
  %248 = vdwg.mxu0
  %v249 = vmax.f32 %v231, 0.0
  %v250 = vmax.f32 %v236, 0.0
  %v251 = vmax.f32 %v241, 0.0
  %v252 = vmax.f32 %v246, 0.0
  %v253 = vlaneseq
  %v254 = vshrl.u32 %v253, 7
  %v255 = vadd.s32 %v254, 8
  %vm256 = vcmp.lt.s32.totalorder %v254, 12
  %vm257 = vcmp.lt.s32.totalorder %v255, 12
  %v258 = vsel %vm256, %v249, -inf
  %v259 = vsel %vm257, %v250, -inf
  %v260 = vsel %vm256, %v251, -inf
  %v261 = vsel %vm257, %v252, -inf
  %vm262 = vcmask 261120
  %v263 = vsel %vm262, %v258, -inf
  %v264 = vsel %vm262, %v259, -inf
  %v265 = vmax.f32 %v263, %v264
  %v266 = vrot.slane %v265, 4
  %v267 = vmax.f32 %v265, %v266
  %v268 = vrot.slane %v267, 2
  %v269 = vmax.f32 %v267, %v268
  %v270 = vrot.slane %v269, 1
  %v271 = vmax.f32 %v269, %v270
  %v272 = vsel %vm262, %v260, -inf
  %v273 = vsel %vm262, %v261, -inf
  %v274 = vmax.f32 %v272, %v273
  %v275 = vrot.slane %v274, 4
  %v276 = vmax.f32 %v274, %v275
  %v277 = vrot.slane %v276, 2
  %v278 = vmax.f32 %v276, %v277
  %v279 = vrot.slane %v278, 1
  %v280 = vmax.f32 %v278, %v279
  %vm281 = vcmp.eq.f32.partialorder %v258, %v271
  %vm282 = vcmp.eq.f32.partialorder %v259, %v271
  %vm283 = vcmp.eq.f32.partialorder %v260, %v280
  %vm284 = vcmp.eq.f32.partialorder %v261, %v280
  %v285 = vsel %vm281, %v254, 16
  %v286 = vsel %vm282, %v255, 16
  %v287 = vsel %vm283, %v254, 16
  %v288 = vsel %vm284, %v255, 16
  %v289 = vsel %vm262, %v285, 2147483647
  %v290 = vsel %vm262, %v286, 2147483647
  %vm291 = vcmp.lt.s32.totalorder %v289, %v290
  %v292 = vsel %vm291, %v289, %v290
  %v293 = vrot.slane %v292, 4
  %vm294 = vcmp.lt.s32.totalorder %v292, %v293
  %v295 = vsel %vm294, %v292, %v293
  %v296 = vrot.slane %v295, 2
  %vm297 = vcmp.lt.s32.totalorder %v295, %v296
  %v298 = vsel %vm297, %v295, %v296
  %v299 = vrot.slane %v298, 1
  %vm300 = vcmp.lt.s32.totalorder %v298, %v299
  %v301 = vsel %vm300, %v298, %v299
  %v302 = vsel %vm262, %v287, 2147483647
  %v303 = vsel %vm262, %v288, 2147483647
  %vm304 = vcmp.lt.s32.totalorder %v302, %v303
  %v305 = vsel %vm304, %v302, %v303
  %v306 = vrot.slane %v305, 4
  %vm307 = vcmp.lt.s32.totalorder %v305, %v306
  %v308 = vsel %vm307, %v305, %v306
  %v309 = vrot.slane %v308, 2
  %vm310 = vcmp.lt.s32.totalorder %v308, %v309
  %v311 = vsel %vm310, %v308, %v309
  %v312 = vrot.slane %v311, 1
  %vm313 = vcmp.lt.s32.totalorder %v311, %v312
  %v314 = vsel %vm313, %v311, %v312
  %v315 = vcvt.s32.f32 %v301
  %v316 = vcvt.s32.f32 %v314
  %vm319 = vcmask 1041409
  %v320 = vsel %vm319, %v280, %v271
  %v324 = vsel %vm319, %v316, %v315
  %325 = vrot.lane.b32.xlu0 %v324, 32
  %v326 = vpop.permute.xlu0 %325
  %v328 = vsel %vm262, %v320, %v326
  %vm329 = vcmask 517120
  %330 = vst.msk [vmem:[%s3] sm:$0x3] %vm329, %v328
  // Predicated region
  $region14: #{cnn_forward.1} parent=0 // pred_check
    _
  $region15: #{cnn_forward.1} parent=0 // pred_check_branch
    %332 = sbr.rel (0) target = $region17
  $region16: #{cnn_forward.1} parent=0 // pred_region
    _
  $region17: #{cnn_forward.1} parent=0 // pred_fallthru
    _
  // Predicated region
  $region18: #{cnn_forward.1} parent=0 // pred_check
    _
  $region19: #{cnn_forward.1} parent=0 // pred_check_branch
    %334 = sbr.rel (0) target = $region21
  $region20: #{cnn_forward.1} parent=0 // pred_region
    _
  $region21: #{cnn_forward.1} parent=0 // pred_fallthru
    _

</llo_original>
